<compile_context>
chip_gen: v7x
topology: tpu7x:2x2x1
jax: 0.10.0
libtpu: 0.0.40
codegen_flags: <defaults>
</compile_context>

<pallas_src>
from functools import partial

import jax
import jax.numpy as jnp
from jax.experimental import pallas as pl
from jax.experimental.pallas import tpu as pltpu


def _round_up(v, m):
    return ((v + m - 1) // m) * m


def _pad_to(a, shape):
    return jnp.pad(a, [(0, s - d) for d, s in zip(a.shape, shape)])


# ----------------------------------------------------------------------------
# Fused forward kernel: H0 load -> num_layers x (GIN conv) -> mean-pool head.
# Grid axis 0 = layer index (sequential).  H and A live in VMEM scratch.
# ----------------------------------------------------------------------------
def _fused_forward_kernel(h0_hbm_ref, adj_hbm_ref, w1_ref, w2_ref, bias_ref,
                          pool_ref, head_w_ref, head_b_ref,
                          out_ref, h_ref, adj_ref, dma_sems,
                          *, weights_resident):
    layer = pl.program_id(0)

    # ---- first grid step: DMA encoded features and adjacency into VMEM ------
    # (A is fetched exactly once and stays resident for all layers.)
    @pl.when(layer == 0)
    def _():
        cp_h = pltpu.make_async_copy(h0_hbm_ref, h_ref, dma_sems.at[0])
        cp_a = pltpu.make_async_copy(adj_hbm_ref, adj_ref, dma_sems.at[1])
        cp_h.start()
        cp_a.start()
        cp_h.wait()
        cp_a.wait()

    # ---- per-layer parameters ------------------------------------------------
    if weights_resident:
        # whole weight stacks are resident in VMEM; pick this layer's slice.
        w1 = w1_ref[layer]
        w2 = w2_ref[layer]
        b = bias_ref[layer]
    else:
        # streamed one layer per grid step (leading dim squeezed by BlockSpec).
        w1 = w1_ref[...]
        w2 = w2_ref[...]
        b = bias_ref[...]

    b1 = b[0:1, :]            # MLP first bias
    b2 = b[1:2, :]            # MLP second bias with eval-mode BN folded in
    one_plus_eps = b[2:3, :]  # GIN self-term coefficient, kept in f32

    # ---- one GIN-style conv layer --------------------------------------------
    h = h_ref[...]                                   # f32, resident in VMEM
    h_bf = h.astype(jnp.bfloat16)

    # z = A @ H  (MXU, bf16 in / f32 acc)  +  (1+eps) * H  (VPU, f32)
    z = jnp.dot(adj_ref[...], h_bf, preferred_element_type=jnp.float32) \
        + one_plus_eps * h

    h1 = jnp.maximum(
        jnp.dot(z.astype(jnp.bfloat16), w1,
                preferred_element_type=jnp.float32) + b1,
        0.0,
    )
    # second linear; eval-mode BatchNorm (running stats) pre-folded into W2/b2
    h2 = jnp.dot(h1.astype(jnp.bfloat16), w2,
                 preferred_element_type=jnp.float32) + b2

    # residual + ReLU.  Padded node rows accumulate bias garbage, but the pool
    # matrix's padded columns are zero so it never reaches the output.
    h_ref[...] = jnp.maximum(h + h2, 0.0)

    # ---- head (last grid step only): out = (P @ H) @ Wh + bh ----------------
    # NOTE: out_ref has a constant index_map, so the block stays resident and
    # is written back once at the end; do not change this to a varying spec.
    @pl.when(layer == pl.num_programs(0) - 1)
    def _():
        hn = h_ref[...].astype(jnp.bfloat16)
        gpool = jnp.dot(pool_ref[...], hn, preferred_element_type=jnp.float32)
        out_ref[...] = (
            jnp.dot(gpool.astype(jnp.bfloat16), head_w_ref[...],
                    preferred_element_type=jnp.float32)
            + head_b_ref[...]
        )


# ----------------------------------------------------------------------------
# Wrapper: parameter folding + padding + single pallas_call.
# ----------------------------------------------------------------------------
def vgn_model_v2_forward(x, adj, pool, params):
    n, _ = x.shape
    hidden = params["enc_w"].shape[1]
    dout = params["head_w"].shape[1]
    g = pool.shape[0]
    num_layers = len(params["layers"])

    # Node count padded to 128: lane dim for adj/pool and K dim of A@H.
    n_p = _round_up(n, 128)
    g_p = _round_up(g, 8)
    h_p = _round_up(hidden, 128)
    dout_p = _round_up(dout, 128)
    # TODO(synk): on v6e/v7x with hidden > 128, round h_p (and a row tile) to
    #             256 to fill the 2x256x256 MXU; v5e stays best at 128.

    # ---- encoder (one-shot, tiny) done in f32 in XLA: avoids padding din ----
    h0 = x.astype(jnp.float32) @ params["enc_w"] + params["enc_b"]
    h0_p = _pad_to(h0, (n_p, h_p)).astype(jnp.float32)

    # ---- single adjacency copy (no per-layer folding / stacking) ------------
    adj_p = _pad_to(adj, (n_p, n_p)).astype(jnp.bfloat16)

    # ---- per-layer weights: fold eval-mode BN into W2/b2, pack biases -------
    w1_l, w2_l, bias_l = [], [], []
    for lp in params["layers"]:
        scale = lp["gamma"] * jax.lax.rsqrt(lp["var"] + 1e-5)      # (1, hidden)
        w2_fold = lp["w2"] * scale
        b2_fold = (lp["b2"] - lp["mean"]) * scale + lp["beta"]
        eps_row = (1.0 + lp["eps"][0, 0]) * jnp.ones((1, hidden), jnp.float32)
        w1_l.append(_pad_to(lp["w1"], (h_p, h_p)))
        w2_l.append(_pad_to(w2_fold, (h_p, h_p)))
        bias_l.append(_pad_to(
            jnp.concatenate([lp["b1"], b2_fold, eps_row], 0), (3, h_p)))

    w1_stack = jnp.stack(w1_l).astype(jnp.bfloat16)       # [L, h_p, h_p]
    w2_stack = jnp.stack(w2_l).astype(jnp.bfloat16)       # [L, h_p, h_p]
    bias_stack = jnp.stack(bias_l).astype(jnp.float32)    # [L, 3, h_p]

    pool_p = _pad_to(pool, (g_p, n_p)).astype(jnp.bfloat16)
    head_w = _pad_to(params["head_w"], (h_p, dout_p)).astype(jnp.bfloat16)
    head_b = _pad_to(params["head_b"], (1, dout_p)).astype(jnp.float32)

    # ---- small-model fast path: keep ALL layer weights resident in VMEM -----
    per_layer_w_bytes = 2 * h_p * h_p * 2 + 3 * h_p * 4
    weights_resident = num_layers * per_layer_w_bytes <= 4 * 1024 * 1024

    if weights_resident:
        w1_spec = pl.BlockSpec((num_layers, h_p, h_p), lambda l: (0, 0, 0))
        w2_spec = pl.BlockSpec((num_layers, h_p, h_p), lambda l: (0, 0, 0))
        b_spec = pl.BlockSpec((num_layers, 3, h_p), lambda l: (0, 0, 0))
    else:
        # stream one layer per grid step; leading dim squeezed out of the ref.
        w1_spec = pl.BlockSpec((None, h_p, h_p), lambda l: (l, 0, 0))
        w2_spec = pl.BlockSpec((None, h_p, h_p), lambda l: (l, 0, 0))
        b_spec = pl.BlockSpec((None, 3, h_p), lambda l: (l, 0, 0))

    # ---- VMEM budget (resident set + pipelining + temporaries) --------------
    w_buf_bytes = (2 * num_layers if weights_resident else 2) * per_layer_w_bytes
    resident_bytes = (
        n_p * h_p * 4                      # H scratch
        + n_p * n_p * 2                    # A scratch (single copy)
        + w_buf_bytes
        + 2 * (pool_p.size * 2 + head_w.size * 2 + head_b.size * 4)
        + 2 * g_p * dout_p * 4             # output block
        + 8 * n_p * h_p * 4                # elementwise/matmul temporaries
    )
    vmem_limit = int(min(64 * 1024 * 1024,
                         max(32 * 1024 * 1024, int(1.5 * resident_bytes))))

    # ---- cost estimate for XLA scheduling around the fused custom call ------
    flops = (num_layers * (2 * n_p * n_p * h_p + 4 * n_p * h_p * h_p)
             + 2 * g_p * n_p * h_p + 2 * g_p * h_p * dout_p)
    bytes_accessed = (h0_p.size * 4 + adj_p.size * 2
                      + w1_stack.size * 2 + w2_stack.size * 2
                      + bias_stack.size * 4
                      + pool_p.size * 2 + head_w.size * 2 + head_b.size * 4
                      + g_p * dout_p * 4)
    cost = pl.CostEstimate(flops=int(flops), transcendentals=0,
                           bytes_accessed=int(bytes_accessed))

    out_p = pl.pallas_call(
        partial(_fused_forward_kernel, weights_resident=weights_resident),
        out_shape=jax.ShapeDtypeStruct((g_p, dout_p), jnp.float32),
        grid=(num_layers,),
        in_specs=[
            pl.BlockSpec(memory_space=pl.ANY),               # H0 (raw HBM ref)
            pl.BlockSpec(memory_space=pl.ANY),               # A  (raw HBM ref)
            w1_spec,                                         # W1 per layer
            w2_spec,                                         # W2' (BN-folded)
            b_spec,                                          # [b1; b2'; 1+eps]
            pl.BlockSpec((g_p, n_p), lambda l: (0, 0)),      # pool
            pl.BlockSpec((h_p, dout_p), lambda l: (0, 0)),   # head_w
            pl.BlockSpec((1, dout_p), lambda l: (0, 0)),     # head_b
        ],
        out_specs=pl.BlockSpec((g_p, dout_p), lambda l: (0, 0)),
        scratch_shapes=[
            pltpu.VMEM((n_p, h_p), jnp.float32),             # resident H
            pltpu.VMEM((n_p, n_p), jnp.bfloat16),            # resident A (x1)
            pltpu.SemaphoreType.DMA((2,)),                   # H0 / A DMAs
        ],
        compiler_params=pltpu.CompilerParams(
            dimension_semantics=("arbitrary",),
            vmem_limit_bytes=vmem_limit),
        cost_estimate=cost,
    )(h0_p, adj_p, w1_stack, w2_stack, bias_stack, pool_p, head_w, head_b)

    return out_p[:g, :dout]


# ----------------------------------------------------------------------------
# Pure-JAX f32 reference (un-fused, un-folded) for a sanity check.
# ----------------------------------------------------------------------------
def reference_forward(x, adj, pool, params):
    h = x @ params["enc_w"] + params["enc_b"]
    for lp in params["layers"]:
        z = (1.0 + lp["eps"][0, 0]) * h + adj @ h
        h1 = jnp.maximum(z @ lp["w1"] + lp["b1"], 0.0)
        h2 = h1 @ lp["w2"] + lp["b2"]
        bn = (h2 - lp["mean"]) * jax.lax.rsqrt(lp["var"] + 1e-5) * lp["gamma"] \
            + lp["beta"]
        h = jnp.maximum(h + bn, 0.0)
    return pool @ h @ params["head_w"] + params["head_b"]


def init_params(key, dim_in, hidden, num_layers, dim_out):
    keys = jax.random.split(key, 4 + 4 * num_layers)
    p = {
        "enc_w": 0.1 * jax.random.normal(keys[0], (dim_in, hidden), jnp.float32),
        "enc_b": 0.1 * jax.random.normal(keys[1], (1, hidden), jnp.float32),
        "head_w": 0.1 * jax.random.normal(keys[2], (hidden, dim_out), jnp.float32),
        "head_b": 0.1 * jax.random.normal(keys[3], (1, dim_out), jnp.float32),
        "layers": [],
    }
    for l in range(num_layers):
        k0, k1, k2, k3 = keys[4 + 4 * l: 8 + 4 * l]
        p["layers"].append({
            "eps": jnp.full((1, 1), 0.1, jnp.float32),          # train_eps init
            "w1": 0.1 * jax.random.normal(k0, (hidden, hidden), jnp.float32),
            "b1": 0.1 * jax.random.normal(k1, (1, hidden), jnp.float32),
            "w2": 0.1 * jax.random.normal(k2, (hidden, hidden), jnp.float32),
            "b2": 0.1 * jax.random.normal(k3, (1, hidden), jnp.float32),
            "gamma": jnp.ones((1, hidden), jnp.float32),
            "beta": jnp.zeros((1, hidden), jnp.float32),
            "mean": jnp.full((1, hidden), 0.05, jnp.float32),   # running stats
            "var": jnp.full((1, hidden), 1.2, jnp.float32),
        })
    return p


if __name__ == "__main__":
    # Small, deterministic synthetic graph batch:
    #   2 graphs x 8 nodes each = 16 nodes, dim_in=4, hidden=32, 2 MP layers,
    #   dim_out=3.
    N, DIM_IN, HIDDEN, NUM_LAYERS, G, DIM_OUT = 16, 4, 32, 2, 2, 3
    key = jax.random.PRNGKey(0)
    kx, kp = jax.random.split(key)

    x = jax.random.normal(kx, (N, DIM_IN), jnp.float32)

    # Ring adjacency within each graph (symmetric, no self loops).
    adj = jnp.zeros((N, N), jnp.float32)
    per = N // G
    for g in range(G):
        for i in range(per):
            a = g * per + i
            b = g * per + (i + 1) % per
            adj = adj.at[a, b].set(1.0).at[b, a].set(1.0)

    # Mean-pool matrix [G, N].
    pool = jnp.zeros((G, N), jnp.float32)
    for g in range(G):
        pool = pool.at[g, g * per:(g + 1) * per].set(1.0 / per)

    params = init_params(kp, DIM_IN, HIDDEN, NUM_LAYERS, G and DIM_OUT)

    out = vgn_model_v2_forward(x, adj, pool, params)
    jax.block_until_ready(out)
    assert out.shape == (G, DIM_OUT)

    # bf16-tolerance sanity check against the f32 reference.
    ref = reference_forward(x, adj, pool, params)
    assert jnp.allclose(out, ref, rtol=1e-1, atol=1e-1)

    print("KERNEL_OK")
</pallas_src>

<mosaic_0001>
module attributes {stable_mosaic.version = 11 : i64} {
  func.func @_fused_forward_kernel(%arg0: i32, %arg1: memref<128x128xf32, #tpu.memory_space<any>>, %arg2: memref<128x128xbf16, #tpu.memory_space<any>>, %arg3: memref<2x128x128xbf16, #tpu.memory_space<vmem>>, %arg4: memref<2x128x128xbf16, #tpu.memory_space<vmem>>, %arg5: memref<2x3x128xf32, #tpu.memory_space<vmem>>, %arg6: memref<8x128xbf16, #tpu.memory_space<vmem>>, %arg7: memref<128x128xbf16, #tpu.memory_space<vmem>>, %arg8: memref<1x128xf32, #tpu.memory_space<vmem>>, %arg9: memref<8x128xf32, #tpu.memory_space<vmem>>, %arg10: memref<128x128xf32, #tpu.memory_space<vmem>>, %arg11: memref<128x128xbf16, #tpu.memory_space<vmem>>, %arg12: memref<2x!tpu.dma_semaphore, #tpu.memory_space<semaphore_mem>>) attributes {dimension_semantics = [#tpu.dimension_semantics<arbitrary>], iteration_bounds = array<i64: 2>, scalar_prefetch = 0 : i64, scratch_operands = 3 : i64, tpu.core_type = #tpu.core_type<tc>, window_params = [{}, {}, {pipeline_mode = #tpu.pipeline_mode<synchronous>, transform_indices = @transform_2, window_bounds = array<i64: 2, 128, 128>}, {pipeline_mode = #tpu.pipeline_mode<synchronous>, transform_indices = @transform_3, window_bounds = array<i64: 2, 128, 128>}, {pipeline_mode = #tpu.pipeline_mode<synchronous>, transform_indices = @transform_4, window_bounds = array<i64: 2, 3, 128>}, {pipeline_mode = #tpu.pipeline_mode<synchronous>, transform_indices = @transform_5, window_bounds = array<i64: 8, 128>}, {pipeline_mode = #tpu.pipeline_mode<synchronous>, transform_indices = @transform_6, window_bounds = array<i64: 128, 128>}, {pipeline_mode = #tpu.pipeline_mode<synchronous>, transform_indices = @transform_7, window_bounds = array<i64: 1, 128>}, {pipeline_mode = #tpu.pipeline_mode<synchronous>, transform_indices = @transform_8, window_bounds = array<i64: 8, 128>}]} {
    %c0_i32 = arith.constant 0 : i32
    %0 = arith.cmpi eq, %arg0, %c0_i32 : i32
    %1 = arith.extui %0 : i1 to i32
    %c0_i32_0 = arith.constant 0 : i32
    %2 = arith.cmpi ne, %1, %c0_i32_0 : i32
    scf.if %2 {
      %c0_i32_17 = arith.constant 0 : i32
      %39 = tpu.memref_slice %arg12[%c0_i32_17] : memref<2x!tpu.dma_semaphore, #tpu.memory_space<semaphore_mem>> -> memref<1x!tpu.dma_semaphore, #tpu.memory_space<semaphore_mem>>
      %40 = tpu.memref_squeeze %39 : memref<1x!tpu.dma_semaphore, #tpu.memory_space<semaphore_mem>> -> memref<!tpu.dma_semaphore, #tpu.memory_space<semaphore_mem>>
      tpu.enqueue_dma source(%arg1 : memref<128x128xf32, #tpu.memory_space<any>>) target(%arg10 : memref<128x128xf32, #tpu.memory_space<vmem>>) target_semaphore(%40 : memref<!tpu.dma_semaphore, #tpu.memory_space<semaphore_mem>>)
      %c1_i32_18 = arith.constant 1 : i32
      %41 = tpu.memref_slice %arg12[%c1_i32_18] : memref<2x!tpu.dma_semaphore, #tpu.memory_space<semaphore_mem>> -> memref<1x!tpu.dma_semaphore, #tpu.memory_space<semaphore_mem>>
      %42 = tpu.memref_squeeze %41 : memref<1x!tpu.dma_semaphore, #tpu.memory_space<semaphore_mem>> -> memref<!tpu.dma_semaphore, #tpu.memory_space<semaphore_mem>>
      tpu.enqueue_dma source(%arg2 : memref<128x128xbf16, #tpu.memory_space<any>>) target(%arg11 : memref<128x128xbf16, #tpu.memory_space<vmem>>) target_semaphore(%42 : memref<!tpu.dma_semaphore, #tpu.memory_space<semaphore_mem>>)
      %c0_i32_19 = arith.constant 0 : i32
      %43 = tpu.memref_slice %arg12[%c0_i32_19] : memref<2x!tpu.dma_semaphore, #tpu.memory_space<semaphore_mem>> -> memref<1x!tpu.dma_semaphore, #tpu.memory_space<semaphore_mem>>
      %44 = tpu.memref_squeeze %43 : memref<1x!tpu.dma_semaphore, #tpu.memory_space<semaphore_mem>> -> memref<!tpu.dma_semaphore, #tpu.memory_space<semaphore_mem>>
      tpu.wait_dma2 semaphore(%44 : memref<!tpu.dma_semaphore, #tpu.memory_space<semaphore_mem>>) src(%arg1 : memref<128x128xf32, #tpu.memory_space<any>>) dst(%arg10 : memref<128x128xf32, #tpu.memory_space<vmem>>)
      %c1_i32_20 = arith.constant 1 : i32
      %45 = tpu.memref_slice %arg12[%c1_i32_20] : memref<2x!tpu.dma_semaphore, #tpu.memory_space<semaphore_mem>> -> memref<1x!tpu.dma_semaphore, #tpu.memory_space<semaphore_mem>>
      %46 = tpu.memref_squeeze %45 : memref<1x!tpu.dma_semaphore, #tpu.memory_space<semaphore_mem>> -> memref<!tpu.dma_semaphore, #tpu.memory_space<semaphore_mem>>
      tpu.wait_dma2 semaphore(%46 : memref<!tpu.dma_semaphore, #tpu.memory_space<semaphore_mem>>) src(%arg2 : memref<128x128xbf16, #tpu.memory_space<any>>) dst(%arg11 : memref<128x128xbf16, #tpu.memory_space<vmem>>)
    } else {
    }
    %3 = arith.index_cast %arg0 : i32 to index
    %c0 = arith.constant 0 : index
    %c0_1 = arith.constant 0 : index
    %4 = vector.load %arg3[%3, %c0, %c0_1] : memref<2x128x128xbf16, #tpu.memory_space<vmem>>, vector<1x128x128xbf16>
    %5 = vector.shape_cast %4 : vector<1x128x128xbf16> to vector<128x128xbf16>
    %6 = arith.index_cast %arg0 : i32 to index
    %c0_2 = arith.constant 0 : index
    %c0_3 = arith.constant 0 : index
    %7 = vector.load %arg4[%6, %c0_2, %c0_3] : memref<2x128x128xbf16, #tpu.memory_space<vmem>>, vector<1x128x128xbf16>
    %8 = vector.shape_cast %7 : vector<1x128x128xbf16> to vector<128x128xbf16>
    %9 = arith.index_cast %arg0 : i32 to index
    %c0_4 = arith.constant 0 : index
    %c0_5 = arith.constant 0 : index
    %10 = vector.load %arg5[%9, %c0_4, %c0_5] : memref<2x3x128xf32, #tpu.memory_space<vmem>>, vector<1x3x128xf32>
    %11 = vector.shape_cast %10 : vector<1x3x128xf32> to vector<3x128xf32>
    %12 = vector.extract_strided_slice %11 {offsets = [0, 0], sizes = [1, 128], strides = [1, 1]} : vector<3x128xf32> to vector<1x128xf32>
    %13 = vector.extract_strided_slice %11 {offsets = [1, 0], sizes = [1, 128], strides = [1, 1]} : vector<3x128xf32> to vector<1x128xf32>
    %14 = vector.extract_strided_slice %11 {offsets = [2, 0], sizes = [1, 128], strides = [1, 1]} : vector<3x128xf32> to vector<1x128xf32>
    %c0_6 = arith.constant 0 : index
    %c0_7 = arith.constant 0 : index
    %15 = vector.load %arg10[%c0_6, %c0_7] : memref<128x128xf32, #tpu.memory_space<vmem>>, vector<128x128xf32>
    %16 = arith.truncf %15 : vector<128x128xf32> to vector<128x128xbf16>
    %c0_8 = arith.constant 0 : index
    %c0_9 = arith.constant 0 : index
    %17 = vector.load %arg11[%c0_8, %c0_9] : memref<128x128xbf16, #tpu.memory_space<vmem>>, vector<128x128xbf16>
    %cst = arith.constant dense<0.000000e+00> : vector<128x128xf32>
    %18 = tpu.matmul %17, %16, %cst {dimension_numbers = #tpu.dot_dimension_numbers<[1], [0], [0], [1], [0, 0, 1, 1], [], []>} : vector<128x128xbf16>, vector<128x128xbf16>, vector<128x128xf32> -> vector<128x128xf32>
    %19 = vector.broadcast %14 : vector<1x128xf32> to vector<128x128xf32>
    %20 = arith.mulf %19, %15 : vector<128x128xf32>
    %21 = arith.addf %18, %20 : vector<128x128xf32>
    %22 = arith.truncf %21 : vector<128x128xf32> to vector<128x128xbf16>
    %cst_10 = arith.constant dense<0.000000e+00> : vector<128x128xf32>
    %23 = tpu.matmul %22, %5, %cst_10 {dimension_numbers = #tpu.dot_dimension_numbers<[1], [0], [0], [1], [0, 0, 1, 1], [], []>} : vector<128x128xbf16>, vector<128x128xbf16>, vector<128x128xf32> -> vector<128x128xf32>
    %24 = vector.broadcast %12 : vector<1x128xf32> to vector<128x128xf32>
    %25 = arith.addf %23, %24 : vector<128x128xf32>
    %cst_11 = arith.constant 0.000000e+00 : f32
    %26 = vector.broadcast %cst_11 : f32 to vector<128x128xf32>
    %27 = arith.maximumf %25, %26 : vector<128x128xf32>
    %28 = arith.truncf %27 : vector<128x128xf32> to vector<128x128xbf16>
    %cst_12 = arith.constant dense<0.000000e+00> : vector<128x128xf32>
    %29 = tpu.matmul %28, %8, %cst_12 {dimension_numbers = #tpu.dot_dimension_numbers<[1], [0], [0], [1], [0, 0, 1, 1], [], []>} : vector<128x128xbf16>, vector<128x128xbf16>, vector<128x128xf32> -> vector<128x128xf32>
    %30 = vector.broadcast %13 : vector<1x128xf32> to vector<128x128xf32>
    %31 = arith.addf %29, %30 : vector<128x128xf32>
    %32 = arith.addf %15, %31 : vector<128x128xf32>
    %cst_13 = arith.constant 0.000000e+00 : f32
    %33 = vector.broadcast %cst_13 : f32 to vector<128x128xf32>
    %34 = arith.maximumf %32, %33 : vector<128x128xf32>
    %c0_14 = arith.constant 0 : index
    %c0_15 = arith.constant 0 : index
    %35 = vector.load %arg10[%c0_14, %c0_15] : memref<128x128xf32, #tpu.memory_space<vmem>>, vector<128x128xf32>
    tpu.vector_store %arg10[%c0_14, %c0_15], %34 {strides = array<i32>} : memref<128x128xf32, #tpu.memory_space<vmem>>, vector<128x128xf32>,
    %c1_i32 = arith.constant 1 : i32
    %36 = arith.cmpi eq, %arg0, %c1_i32 : i32
    %37 = arith.extui %36 : i1 to i32
    %c0_i32_16 = arith.constant 0 : i32
    %38 = arith.cmpi ne, %37, %c0_i32_16 : i32
    scf.if %38 {
      %c0_17 = arith.constant 0 : index
      %c0_18 = arith.constant 0 : index
      %39 = vector.load %arg10[%c0_17, %c0_18] : memref<128x128xf32, #tpu.memory_space<vmem>>, vector<128x128xf32>
      %40 = arith.truncf %39 : vector<128x128xf32> to vector<128x128xbf16>
      %c0_19 = arith.constant 0 : index
      %c0_20 = arith.constant 0 : index
      %41 = vector.load %arg6[%c0_19, %c0_20] : memref<8x128xbf16, #tpu.memory_space<vmem>>, vector<8x128xbf16>
      %cst_21 = arith.constant dense<0.000000e+00> : vector<8x128xf32>
      %42 = tpu.matmul %41, %40, %cst_21 {dimension_numbers = #tpu.dot_dimension_numbers<[1], [0], [0], [1], [0, 0, 1, 1], [], []>} : vector<8x128xbf16>, vector<128x128xbf16>, vector<8x128xf32> -> vector<8x128xf32>
      %43 = arith.truncf %42 : vector<8x128xf32> to vector<8x128xbf16>
      %c0_22 = arith.constant 0 : index
      %c0_23 = arith.constant 0 : index
      %44 = vector.load %arg7[%c0_22, %c0_23] : memref<128x128xbf16, #tpu.memory_space<vmem>>, vector<128x128xbf16>
      %cst_24 = arith.constant dense<0.000000e+00> : vector<8x128xf32>
      %45 = tpu.matmul %43, %44, %cst_24 {dimension_numbers = #tpu.dot_dimension_numbers<[1], [0], [0], [1], [0, 0, 1, 1], [], []>} : vector<8x128xbf16>, vector<128x128xbf16>, vector<8x128xf32> -> vector<8x128xf32>
      %c0_25 = arith.constant 0 : index
      %c0_26 = arith.constant 0 : index
      %46 = vector.load %arg8[%c0_25, %c0_26] : memref<1x128xf32, #tpu.memory_space<vmem>>, vector<1x128xf32>
      %47 = vector.broadcast %46 : vector<1x128xf32> to vector<8x128xf32>
      %48 = arith.addf %45, %47 : vector<8x128xf32>
      %c0_27 = arith.constant 0 : index
      %c0_28 = arith.constant 0 : index
      %49 = vector.load %arg9[%c0_27, %c0_28] : memref<8x128xf32, #tpu.memory_space<vmem>>, vector<8x128xf32>
      tpu.vector_store %arg9[%c0_27, %c0_28], %48 {strides = array<i32>} : memref<8x128xf32, #tpu.memory_space<vmem>>, vector<8x128xf32>,
    } else {
    }
    return
  }
  func.func @transform_2(%arg0: i32) -> (i32, i32, i32) {
    %c0_i32 = arith.constant 0 : i32
    %c0_i32_0 = arith.constant 0 : i32
    %c0_i32_1 = arith.constant 0 : i32
    %c0_i32_2 = arith.constant 0 : i32
    return %c0_i32, %c0_i32_0, %c0_i32_1 : i32, i32, i32
  }
  func.func @transform_3(%arg0: i32) -> (i32, i32, i32) {
    %c0_i32 = arith.constant 0 : i32
    %c0_i32_0 = arith.constant 0 : i32
    %c0_i32_1 = arith.constant 0 : i32
    %c0_i32_2 = arith.constant 0 : i32
    return %c0_i32, %c0_i32_0, %c0_i32_1 : i32, i32, i32
  }
  func.func @transform_4(%arg0: i32) -> (i32, i32, i32) {
    %c0_i32 = arith.constant 0 : i32
    %c0_i32_0 = arith.constant 0 : i32
    %c0_i32_1 = arith.constant 0 : i32
    %c0_i32_2 = arith.constant 0 : i32
    return %c0_i32, %c0_i32_0, %c0_i32_1 : i32, i32, i32
  }
  func.func @transform_5(%arg0: i32) -> (i32, i32) {
    %c0_i32 = arith.constant 0 : i32
    %c0_i32_0 = arith.constant 0 : i32
    %c0_i32_1 = arith.constant 0 : i32
    return %c0_i32, %c0_i32_0 : i32, i32
  }
  func.func @transform_6(%arg0: i32) -> (i32, i32) {
    %c0_i32 = arith.constant 0 : i32
    %c0_i32_0 = arith.constant 0 : i32
    %c0_i32_1 = arith.constant 0 : i32
    return %c0_i32, %c0_i32_0 : i32, i32
  }
  func.func @transform_7(%arg0: i32) -> (i32, i32) {
    %c0_i32 = arith.constant 0 : i32
    %c0_i32_0 = arith.constant 0 : i32
    %c0_i32_1 = arith.constant 0 : i32
    return %c0_i32, %c0_i32_0 : i32, i32
  }
  func.func @transform_8(%arg0: i32) -> (i32, i32) {
    %c0_i32 = arith.constant 0 : i32
    %c0_i32_0 = arith.constant 0 : i32
    %c0_i32_1 = arith.constant 0 : i32
    return %c0_i32, %c0_i32_0 : i32, i32
  }
}

</mosaic_0001>

<llo_original>
// kernel: tpu_custom_call.1
$region0: #{tpu_custom_call.1}
  #allocation0 [shape = 'u32[]', space=smem, size = 0x4, offset = 0x4, fixed_abs, tag = 'smem constant byte address 0x4 - core index']
  #allocation1 [shape = 'u32[144,128]{1,0:T(1,128)}', space=vmem, size = 0x12000, scoped, tag = 'internal scratch']
  #allocation2 [shape = 'f32[128,128]{1,0:T(8,128)}', space=vmem, size = 0x10000, scoped, tag = 'scratch operand']
  #allocation3 [shape = 'bf16[128,128]{1,0:T(16,128)(2,1)}', space=vmem, size = 0x8000, scoped, tag = 'scratch operand']
  #allocation4 [shape = 's32[2]{0}', space=sflag, size = 0x8, scoped, tag = 'scratch operand']
  #allocation12 [shape = 's32[]', space=sflag, size = 0x4, offset = 0, fixed_abs, tag = 'sflag constant byte address 0x0 - dummy sync flag']
  #allocation13 [shape = 's32[]', space=sflag, size = 0x4, offset = 0, fixed_abs, tag = 'sflag constant byte address 0x0 - dummy sync flag']
  #allocation14 [shape = 'u32[]', space=smem, size = 0x4, offset = 0x44, fixed_abs, tag = 'smem constant byte address 0x44 - assertion arg 0']
  #allocation15 [shape = 'u32[]', space=smem, size = 0x4, offset = 0x48, fixed_abs, tag = 'smem constant byte address 0x48 - assertion arg 1']
  #allocation16 [shape = 's32[]', space=sflag, size = 0x4, offset = 0, fixed_abs, tag = 'sflag constant byte address 0x0 - dummy sync flag']
  #allocation17 [shape = 's32[]', space=sflag, size = 0x4, offset = 0, fixed_abs, tag = 'sflag constant byte address 0x0 - dummy sync flag']
  %s0 = inlined_call_operand.hbm [shape: f32[128,128], index: 0, kind: input, shape index: {}]
  %s1 = inlined_call_operand.hbm [shape: bf16[128,128], index: 1, kind: input, shape index: {}]
  %s2 = inlined_call_operand.hbm [shape: bf16[2,128,128], index: 2, kind: input, shape index: {}]
  %s3 = inlined_call_operand.hbm [shape: bf16[2,128,128], index: 3, kind: input, shape index: {}]
  %s4 = inlined_call_operand.vmem [shape: f32[2,3,128], index: 4, kind: input, shape index: {}]
  %s5 = inlined_call_operand.vmem [shape: bf16[8,128], index: 5, kind: input, shape index: {}]
  %s6 = inlined_call_operand.hbm [shape: bf16[128,128], index: 6, kind: input, shape index: {}]
  %s7 = inlined_call_operand.vmem [shape: f32[1,128], index: 7, kind: input, shape index: {}]
  %s8 = inlined_call_operand.hbm [shape: f32[8,128], index: 8, kind: output, shape index: {}]
  %s9 = sld [smem:[#allocation0]]
  $region85: #{tpu_custom_call.1} parent=0
    _
  %s11 = ssub.s32 1, %s9
  %s12 = scalar_select 0, %s11, %s9
  $region1: #{tpu_custom_call.1} parent=0
    #allocation5 [shape = 'u8[65536]{0}', space=vmem, size = 0x10000, scoped, tag = 'input window, operand 2, single buffered']
    #allocation6 [shape = 's32[2]{0}', space=sflag, size = 0x8, scoped, tag = 'scoped memory for tpu_custom_call.1']
    #allocation7 [shape = 's32[2]{0}', space=sflag, size = 0x8, scoped, tag = 'scoped memory for tpu_custom_call.1']
    #allocation8 [shape = 'u8[65536]{0}', space=vmem, size = 0x10000, scoped, tag = 'input window, operand 3, single buffered']
    #allocation9 [shape = 's32[1]{0}', space=sflag, size = 0x4, scoped, tag = 'scoped memory for tpu_custom_call.1']
    #allocation10 [shape = 'u8[32768]{0}', space=vmem, size = 0x8000, scoped, tag = 'input window, operand 6, single buffered']
    #allocation11 [shape = 'u8[4096]{0}', space=vmem, size = 0x1000, scoped, tag = 'output window, operand 0, single buffered']
    %13 = vsyncpa [#allocation6], 0
    %14 = vsyncpa [#allocation9], 0
    %15 = vsyncpa [#allocation7], 0
    loop: start=0, step=1, limit=4
    $region2: #{tpu_custom_call.1} parent=1 // loop_pre_header
      _
    $region3: #{tpu_custom_call.1} parent=1 // loop_header
      %s17 = sphi 0, %s21
      %p18 = scmp.ge.s32.totalorder %s17, 4
      %s25 = sphi 0, %s25
      %s27 = sphi 0, %s25
      %s28 = sphi 0, %s27
      %s42 = sphi 0, %s28
      %s46 = sphi 0, %s46
      %s48 = sphi 0, %s46
      %s49 = sphi 0, %s48
      %s63 = sphi 0, %s49
      %s67 = sphi 0, %s67
      %s69 = sphi 0, %s67
      %s70 = sphi 0, %s69
      %s84 = sphi 0, %s70
      %s88 = sphi 0, %s88
      %s90 = sphi 0, %s88
      %s91 = sphi 0, %s90
      %s105 = sphi 0, %s91
      %s109 = sphi 0, %s109
      %s111 = sphi 0, %s109
      %s112 = sphi 0, %s111
      %s126 = sphi 0, %s112
      %s130 = sphi 0, %s130
      %s132 = sphi 0, %s130
      %s133 = sphi 0, %s132
      %s147 = sphi 0, %s133
      %s151 = sphi 0, %s151
      %s153 = sphi 0, %s151
      %s154 = sphi 0, %s153
      %s168 = sphi 0, %s154
    $region4: #{tpu_custom_call.1} parent=1 // loop_header_branch
      %20 = sbr.rel (%p18) target = $region8
    $region5: #{tpu_custom_call.1} parent=1 // loop_body
      %s22 = ssub.s32 %s17, 1
      %s23 = ssub.s32 %s17, 2
      %s24 = sadd.s32 %s17, 1
      %s26 = sadd.s32 %s25, 1
      %p29 = scmp.eq.s32.totalorder %s17, 1
      %p30 = scmp.ne.s32.totalorder %s25, %s27
      %p31 = scmp.eq.s32.totalorder %s17, 0
      %p32 = por %p30, %p31
      %p33 = scmp.ne.s32.totalorder %s25, %s27
      %p34 = scmp.eq.s32.totalorder %s22, 1
      %p35 = por %p33, %p34
      %p36 = scmp.ne.s32.totalorder %s27, %s28
      %p37 = scmp.eq.s32.totalorder %s22, 0
      %p38 = por %p36, %p37
      %p39 = scmp.ne.s32.totalorder %s27, %s28
      %p40 = scmp.eq.s32.totalorder %s23, 1
      %p41 = por %p39, %p40
      %p43 = scmp.ne.s32.totalorder %s28, %s42
      %p44 = scmp.eq.s32.totalorder %s23, 0
      %p45 = por %p43, %p44
      %s47 = sadd.s32 %s46, 1
      %p50 = scmp.eq.s32.totalorder %s17, 1
      %p51 = scmp.ne.s32.totalorder %s46, %s48
      %p52 = scmp.eq.s32.totalorder %s17, 0
      %p53 = por %p51, %p52
      %p54 = scmp.ne.s32.totalorder %s46, %s48
      %p55 = scmp.eq.s32.totalorder %s22, 1
      %p56 = por %p54, %p55
      %p57 = scmp.ne.s32.totalorder %s48, %s49
      %p58 = scmp.eq.s32.totalorder %s22, 0
      %p59 = por %p57, %p58
      %p60 = scmp.ne.s32.totalorder %s48, %s49
      %p61 = scmp.eq.s32.totalorder %s23, 1
      %p62 = por %p60, %p61
      %p64 = scmp.ne.s32.totalorder %s49, %s63
      %p65 = scmp.eq.s32.totalorder %s23, 0
      %p66 = por %p64, %p65
      %s68 = sadd.s32 %s67, 1
      %p71 = scmp.eq.s32.totalorder %s17, 1
      %p72 = scmp.ne.s32.totalorder %s67, %s69
      %p73 = scmp.eq.s32.totalorder %s17, 0
      %p74 = por %p72, %p73
      %p75 = scmp.ne.s32.totalorder %s67, %s69
      %p76 = scmp.eq.s32.totalorder %s22, 1
      %p77 = por %p75, %p76
      %p78 = scmp.ne.s32.totalorder %s69, %s70
      %p79 = scmp.eq.s32.totalorder %s22, 0
      %p80 = por %p78, %p79
      %p81 = scmp.ne.s32.totalorder %s69, %s70
      %p82 = scmp.eq.s32.totalorder %s23, 1
      %p83 = por %p81, %p82
      %p85 = scmp.ne.s32.totalorder %s70, %s84
      %p86 = scmp.eq.s32.totalorder %s23, 0
      %p87 = por %p85, %p86
      %s89 = sadd.s32 %s88, 1
      %p92 = scmp.eq.s32.totalorder %s17, 1
      %p93 = scmp.ne.s32.totalorder %s88, %s90
      %p94 = scmp.eq.s32.totalorder %s17, 0
      %p95 = por %p93, %p94
      %p96 = scmp.ne.s32.totalorder %s88, %s90
      %p97 = scmp.eq.s32.totalorder %s22, 1
      %p98 = por %p96, %p97
      %p99 = scmp.ne.s32.totalorder %s90, %s91
      %p100 = scmp.eq.s32.totalorder %s22, 0
      %p101 = por %p99, %p100
      %p102 = scmp.ne.s32.totalorder %s90, %s91
      %p103 = scmp.eq.s32.totalorder %s23, 1
      %p104 = por %p102, %p103
      %p106 = scmp.ne.s32.totalorder %s91, %s105
      %p107 = scmp.eq.s32.totalorder %s23, 0
      %p108 = por %p106, %p107
      %s110 = sadd.s32 %s109, 1
      %p113 = scmp.eq.s32.totalorder %s17, 1
      %p114 = scmp.ne.s32.totalorder %s109, %s111
      %p115 = scmp.eq.s32.totalorder %s17, 0
      %p116 = por %p114, %p115
      %p117 = scmp.ne.s32.totalorder %s109, %s111
      %p118 = scmp.eq.s32.totalorder %s22, 1
      %p119 = por %p117, %p118
      %p120 = scmp.ne.s32.totalorder %s111, %s112
      %p121 = scmp.eq.s32.totalorder %s22, 0
      %p122 = por %p120, %p121
      %p123 = scmp.ne.s32.totalorder %s111, %s112
      %p124 = scmp.eq.s32.totalorder %s23, 1
      %p125 = por %p123, %p124
      %p127 = scmp.ne.s32.totalorder %s112, %s126
      %p128 = scmp.eq.s32.totalorder %s23, 0
      %p129 = por %p127, %p128
      %s131 = sadd.s32 %s130, 1
      %p134 = scmp.eq.s32.totalorder %s17, 1
      %p135 = scmp.ne.s32.totalorder %s130, %s132
      %p136 = scmp.eq.s32.totalorder %s17, 0
      %p137 = por %p135, %p136
      %p138 = scmp.ne.s32.totalorder %s130, %s132
      %p139 = scmp.eq.s32.totalorder %s22, 1
      %p140 = por %p138, %p139
      %p141 = scmp.ne.s32.totalorder %s132, %s133
      %p142 = scmp.eq.s32.totalorder %s22, 0
      %p143 = por %p141, %p142
      %p144 = scmp.ne.s32.totalorder %s132, %s133
      %p145 = scmp.eq.s32.totalorder %s23, 1
      %p146 = por %p144, %p145
      %p148 = scmp.ne.s32.totalorder %s133, %s147
      %p149 = scmp.eq.s32.totalorder %s23, 0
      %p150 = por %p148, %p149
      %s152 = sadd.s32 %s151, 1
      %p155 = scmp.eq.s32.totalorder %s17, 1
      %p156 = scmp.ne.s32.totalorder %s151, %s153
      %p157 = scmp.eq.s32.totalorder %s17, 0
      %p158 = por %p156, %p157
      %p159 = scmp.ne.s32.totalorder %s151, %s153
      %p160 = scmp.eq.s32.totalorder %s22, 1
      %p161 = por %p159, %p160
      %p162 = scmp.ne.s32.totalorder %s153, %s154
      %p163 = scmp.eq.s32.totalorder %s22, 0
      %p164 = por %p162, %p163
      %p165 = scmp.ne.s32.totalorder %s153, %s154
      %p166 = scmp.eq.s32.totalorder %s23, 1
      %p167 = por %p165, %p166
      %p169 = scmp.ne.s32.totalorder %s154, %s168
      %p170 = scmp.eq.s32.totalorder %s23, 0
      %p171 = por %p169, %p170
      %p172 = scmp.le.s32.totalorder 1, %s17
      %p173 = scmp.lt.s32.totalorder %s17, 3
      %p174 = pnand %p172, %p173
      %p175 = pneg %p174
      // Predicated region
      $region9: #{tpu_custom_call.1} parent=5 // pred_check
        _
      $region10: #{tpu_custom_call.1} parent=5 // pred_check_branch
        %177 = sbr.rel (%p174) target = $region12
      $region11: #{tpu_custom_call.1} parent=5 // pred_region
        %s178 = ssub.s32 %s17, 1
        // Predicated region
        $region13: #{tpu_custom_call.1} parent=11 // pred_check
          %p179 = pneg %p38
        $region14: #{tpu_custom_call.1} parent=11 // pred_check_branch
          %181 = sbr.rel (%p179) target = $region16
        $region15: #{tpu_custom_call.1} parent=11 // pred_region
          %s183 = ssub.s32 2048, 2048
          %184 = vsyncadd [#allocation6], %s183
          %s185 = sshll.u32 [#allocation5], 4
          %s186 = int_to_ptr.vmem [resolvable:$true] %s185
          %191 = dma.hbm_to_vmem [thread:$0]  %s2, 2048, %s186, [#allocation6], 64, 64, 4
        $region16: #{tpu_custom_call.1} parent=11 // pred_fallthru
          _
        // Predicated region
        $region17: #{tpu_custom_call.1} parent=11 // pred_check
          %p192 = pneg %p59
        $region18: #{tpu_custom_call.1} parent=11 // pred_check_branch
          %194 = sbr.rel (%p192) target = $region20
        $region19: #{tpu_custom_call.1} parent=11 // pred_region
          %s196 = ssub.s32 2048, 2048
          %197 = vsyncadd [#allocation9], %s196
          %s198 = sshll.u32 [#allocation8], 4
          %s199 = int_to_ptr.vmem [resolvable:$true] %s198
          %204 = dma.hbm_to_vmem [thread:$0]  %s3, 2048, %s199, [#allocation9], 64, 64, 4
        $region20: #{tpu_custom_call.1} parent=11 // pred_fallthru
          _
        // Predicated region
        $region21: #{tpu_custom_call.1} parent=11 // pred_check
          %p205 = pneg %p80
        $region22: #{tpu_custom_call.1} parent=11 // pred_check_branch
          %207 = sbr.rel (%p205) target = $region24
        $region23: #{tpu_custom_call.1} parent=11 // pred_region
          _
        $region24: #{tpu_custom_call.1} parent=11 // pred_fallthru
          _
        // Predicated region
        $region25: #{tpu_custom_call.1} parent=11 // pred_check
          %p208 = pneg %p101
        $region26: #{tpu_custom_call.1} parent=11 // pred_check_branch
          %210 = sbr.rel (%p208) target = $region28
        $region27: #{tpu_custom_call.1} parent=11 // pred_region
          _
        $region28: #{tpu_custom_call.1} parent=11 // pred_fallthru
          _
        // Predicated region
        $region29: #{tpu_custom_call.1} parent=11 // pred_check
          %p211 = pneg %p122
        $region30: #{tpu_custom_call.1} parent=11 // pred_check_branch
          %213 = sbr.rel (%p211) target = $region32
        $region31: #{tpu_custom_call.1} parent=11 // pred_region
          %s215 = ssub.s32 1024, 1024
          %216 = vsyncadd [#allocation9], %s215
          %s217 = sshll.u32 [#allocation10], 4
          %s218 = int_to_ptr.vmem [resolvable:$true] %s217
          %223 = dma.hbm_to_vmem [thread:$0]  %s6, 1024, %s218, [#allocation9], 64, 64, 4
        $region32: #{tpu_custom_call.1} parent=11 // pred_fallthru
          _
        // Predicated region
        $region33: #{tpu_custom_call.1} parent=11 // pred_check
          %p224 = pneg %p143
        $region34: #{tpu_custom_call.1} parent=11 // pred_check_branch
          %226 = sbr.rel (%p224) target = $region36
        $region35: #{tpu_custom_call.1} parent=11 // pred_region
          _
        $region36: #{tpu_custom_call.1} parent=11 // pred_fallthru
          _
      $region12: #{tpu_custom_call.1} parent=5 // pred_fallthru
        _
      %p227 = scmp.lt.s32.totalorder %s17, 2
      // Predicated region
      $region37: #{tpu_custom_call.1} parent=5 // pred_check
        %p228 = pneg %p227
      $region38: #{tpu_custom_call.1} parent=5 // pred_check_branch
        %230 = sbr.rel (%p228) target = $region40
      $region39: #{tpu_custom_call.1} parent=5 // pred_region
        _
      $region40: #{tpu_custom_call.1} parent=5 // pred_fallthru
        _
      %p231 = scmp.le.s32.totalorder 1, %s17
      %p232 = scmp.lt.s32.totalorder %s17, 3
      %p233 = pnand %p231, %p232
      %p234 = pneg %p233
      // Predicated region
      $region41: #{tpu_custom_call.1} parent=5 // pred_check
        _
      $region42: #{tpu_custom_call.1} parent=5 // pred_check_branch
        %236 = sbr.rel (%p233) target = $region44
      $region43: #{tpu_custom_call.1} parent=5 // pred_region
        %s237 = ssub.s32 %s17, 1
        // Predicated region
        $region45: #{tpu_custom_call.1} parent=43 // pred_check
          %p238 = pneg %p38
        $region46: #{tpu_custom_call.1} parent=43 // pred_check_branch
          %240 = sbr.rel (%p238) target = $region48
        $region47: #{tpu_custom_call.1} parent=43 // pred_region
          %241 = dma.done [#allocation6], 2048
        $region48: #{tpu_custom_call.1} parent=43 // pred_fallthru
          _
        // Predicated region
        $region49: #{tpu_custom_call.1} parent=43 // pred_check
          %p242 = pneg %p59
        $region50: #{tpu_custom_call.1} parent=43 // pred_check_branch
          %244 = sbr.rel (%p242) target = $region52
        $region51: #{tpu_custom_call.1} parent=43 // pred_region
          %245 = dma.done [#allocation9], 2048
        $region52: #{tpu_custom_call.1} parent=43 // pred_fallthru
          _
        // Predicated region
        $region53: #{tpu_custom_call.1} parent=43 // pred_check
          %p246 = pneg %p122
        $region54: #{tpu_custom_call.1} parent=43 // pred_check_branch
          %248 = sbr.rel (%p246) target = $region56
        $region55: #{tpu_custom_call.1} parent=43 // pred_region
          %249 = dma.done [#allocation9], 1024
        $region56: #{tpu_custom_call.1} parent=43 // pred_fallthru
          _
        %p250 = pneg %p38
        %p251 = pneg %p35
        %p252 = pneg %p59
        %p253 = pneg %p56
        %p254 = pneg %p80
        %p255 = pneg %p77
        %p256 = pneg %p101
        %p257 = pneg %p98
        %p258 = pneg %p122
        %p259 = pneg %p119
        %p260 = pneg %p143
        %p261 = pneg %p140
        %p262 = pneg %p164
        %p263 = pneg %p161
        %p265 = scmp.eq.s32.totalorder %s22, 0
        // Predicated region
        $region57: #{tpu_custom_call.1} parent=43 // pred_check
          %p266 = pneg %p265
        $region58: #{tpu_custom_call.1} parent=43 // pred_check_branch
          %268 = sbr.rel (%p266) target = $region60
        $region59: #{tpu_custom_call.1} parent=43 // pred_region
          // Predicated region
          $region61: #{tpu_custom_call.1} parent=59 // pred_check
            _
          $region62: #{tpu_custom_call.1} parent=59 // pred_check_branch
            %270 = sbr.rel target = $region64
          $region63: #{tpu_custom_call.1} parent=59 // pred_region
            %271 = sst [smem:[#allocation14]] [#allocation13]
            %272 = sst [smem:[#allocation15]] [#allocation12]
          $region64: #{tpu_custom_call.1} parent=59 // pred_fallthru
            _
          %274 = shalt.err (0)
          %s276 = sshll.u32 [#allocation2], 4
          %s277 = int_to_ptr.vmem [resolvable:$true] %s276
          %279 = dma.hbm_to_vmem [thread:$0]  %s0, 2048, %s277, [#allocation4]
          %s280 = scalar_lea.sflag [#allocation4], 1
          // Predicated region
          $region65: #{tpu_custom_call.1} parent=59 // pred_check
            _
          $region66: #{tpu_custom_call.1} parent=59 // pred_check_branch
            %282 = sbr.rel target = $region68
          $region67: #{tpu_custom_call.1} parent=59 // pred_region
            %283 = sst [smem:[#allocation14]] [#allocation17]
            %284 = sst [smem:[#allocation15]] [#allocation16]
          $region68: #{tpu_custom_call.1} parent=59 // pred_fallthru
            _
          %286 = shalt.err (0)
          %s288 = sshll.u32 [#allocation3], 4
          %s289 = int_to_ptr.vmem [resolvable:$true] %s288
          %291 = dma.hbm_to_vmem [thread:$0]  %s1, 1024, %s289, %s280
          %s292 = smul.u32 128, 1
          %s293 = sshll.u32 %s292, 4
          %294 = dma.done [#allocation4], %s293
          %s295 = smul.u32 4, 16
          %s296 = smul.u32 %s295, 1
          %s297 = sshll.u32 %s296, 4
          %298 = dma.done %s280, %s297
        $region60: #{tpu_custom_call.1} parent=43 // pred_fallthru
          _
        %s299 = smul.u32 %s22, 16
        %s300 = smul.addr %s299, 4
        %s301 = scalar_lea.vmem [#allocation5], %s300
        %v302 = vld [vmem:[%s301] sm:$0xf]
        %v303 = vld [vmem:[%s301 + $0x4] sm:$0xf]
        %v304 = vld [vmem:[%s301 + $0x8] sm:$0xf]
        %v305 = vld [vmem:[%s301 + $0xc] sm:$0xf]
        %v306 = vld [vmem:[%s301 + $0x10] sm:$0xf]
        %v307 = vld [vmem:[%s301 + $0x14] sm:$0xf]
        %v308 = vld [vmem:[%s301 + $0x18] sm:$0xf]
        %v309 = vld [vmem:[%s301 + $0x1c] sm:$0xf]
        %v310 = vld [vmem:[%s301 + $0x20] sm:$0xf]
        %v311 = vld [vmem:[%s301 + $0x24] sm:$0xf]
        %v312 = vld [vmem:[%s301 + $0x28] sm:$0xf]
        %v313 = vld [vmem:[%s301 + $0x2c] sm:$0xf]
        %v314 = vld [vmem:[%s301 + $0x30] sm:$0xf]
        %v315 = vld [vmem:[%s301 + $0x34] sm:$0xf]
        %v316 = vld [vmem:[%s301 + $0x38] sm:$0xf]
        %v317 = vld [vmem:[%s301 + $0x3c] sm:$0xf]
        %s318 = smul.addr %s299, 4
        %s319 = scalar_lea.vmem [#allocation8], %s318
        %v320 = vld [vmem:[%s319] sm:$0xf]
        %v321 = vld [vmem:[%s319 + $0x4] sm:$0xf]
        %v322 = vld [vmem:[%s319 + $0x8] sm:$0xf]
        %v323 = vld [vmem:[%s319 + $0xc] sm:$0xf]
        %v324 = vld [vmem:[%s319 + $0x10] sm:$0xf]
        %v325 = vld [vmem:[%s319 + $0x14] sm:$0xf]
        %v326 = vld [vmem:[%s319 + $0x18] sm:$0xf]
        %v327 = vld [vmem:[%s319 + $0x1c] sm:$0xf]
        %v328 = vld [vmem:[%s319 + $0x20] sm:$0xf]
        %v329 = vld [vmem:[%s319 + $0x24] sm:$0xf]
        %v330 = vld [vmem:[%s319 + $0x28] sm:$0xf]
        %v331 = vld [vmem:[%s319 + $0x2c] sm:$0xf]
        %v332 = vld [vmem:[%s319 + $0x30] sm:$0xf]
        %v333 = vld [vmem:[%s319 + $0x34] sm:$0xf]
        %v334 = vld [vmem:[%s319 + $0x38] sm:$0xf]
        %v335 = vld [vmem:[%s319 + $0x3c] sm:$0xf]
        %s336 = smul.u32 %s22, 4
        %s337 = scalar_lea.vmem %s4, %s336
        %v338 = vld [vmem:[%s337] sm:$0x7]
        %v339 = vld [vmem:[#allocation2] sm:$0xff]
        %v340 = vld [vmem:[#allocation2 + $0x8] sm:$0xff]
        %v341 = vld [vmem:[#allocation2 + $0x10] sm:$0xff]
        %v342 = vld [vmem:[#allocation2 + $0x18] sm:$0xff]
        %v343 = vld [vmem:[#allocation2 + $0x20] sm:$0xff]
        %v344 = vld [vmem:[#allocation2 + $0x28] sm:$0xff]
        %v345 = vld [vmem:[#allocation2 + $0x30] sm:$0xff]
        %v346 = vld [vmem:[#allocation2 + $0x38] sm:$0xff]
        %v347 = vld [vmem:[#allocation2 + $0x40] sm:$0xff]
        %v348 = vld [vmem:[#allocation2 + $0x48] sm:$0xff]
        %v349 = vld [vmem:[#allocation2 + $0x50] sm:$0xff]
        %v350 = vld [vmem:[#allocation2 + $0x58] sm:$0xff]
        %v351 = vld [vmem:[#allocation2 + $0x60] sm:$0xff]
        %v352 = vld [vmem:[#allocation2 + $0x68] sm:$0xff]
        %v353 = vld [vmem:[#allocation2 + $0x70] sm:$0xff]
        %v354 = vld [vmem:[#allocation2 + $0x78] sm:$0xff]
        %v355 = vpack.c.bf16 %v340, %v339
        %v356 = vpack.c.bf16 %v342, %v341
        %v357 = vpack.c.bf16 %v344, %v343
        %v358 = vpack.c.bf16 %v346, %v345
        %v359 = vpack.c.bf16 %v348, %v347
        %v360 = vpack.c.bf16 %v350, %v349
        %v361 = vpack.c.bf16 %v352, %v351
        %v362 = vpack.c.bf16 %v354, %v353
        %v363 = vld [vmem:[#allocation3] sm:$0xff]
        %v364 = vld [vmem:[#allocation3 + $0x8] sm:$0xff]
        %v365 = vld [vmem:[#allocation3 + $0x10] sm:$0xff]
        %v366 = vld [vmem:[#allocation3 + $0x18] sm:$0xff]
        %v367 = vld [vmem:[#allocation3 + $0x20] sm:$0xff]
        %v368 = vld [vmem:[#allocation3 + $0x28] sm:$0xff]
        %v369 = vld [vmem:[#allocation3 + $0x30] sm:$0xff]
        %v370 = vld [vmem:[#allocation3 + $0x38] sm:$0xff]
        %v371 = vlaneseq
        %v372 = vshrl.u32 %v371, 7
        %v373 = vsub.s32 2, %v372
        %v374 = vrot.slane %v338, %v373
        %v375 = vmul.f32 %v374, %v339
        %v376 = vmul.f32 %v374, %v340
        %v377 = vmul.f32 %v374, %v341
        %v378 = vmul.f32 %v374, %v342
        %v379 = vmul.f32 %v374, %v343
        %v380 = vmul.f32 %v374, %v344
        %v381 = vmul.f32 %v374, %v345
        %v382 = vmul.f32 %v374, %v346
        %v383 = vmul.f32 %v374, %v347
        %v384 = vmul.f32 %v374, %v348
        %v385 = vmul.f32 %v374, %v349
        %v386 = vmul.f32 %v374, %v350
        %v387 = vmul.f32 %v374, %v351
        %v388 = vmul.f32 %v374, %v352
        %v389 = vmul.f32 %v374, %v353
        %v390 = vmul.f32 %v374, %v354
        %391 = vmatprep.subr.bf16.mxu0 0
        %392 = vmatpush1.bf16.msra.mxu0 %v355
        %393 = vmatprep.subr.bf16.mxu0 0
        %394 = vmatpush1.bf16.msra.mxu0 %v356
        %395 = vmatprep.subr.bf16.mxu0 0
        %396 = vmatpush1.bf16.msra.mxu0 %v357
        %397 = vmatprep.subr.bf16.mxu0 0
        %398 = vmatpush1.bf16.msra.mxu0 %v358
        %399 = vmatprep.subr.bf16.mxu0 0
        %400 = vmatpush1.bf16.msra.mxu0 %v359
        %401 = vmatprep.subr.bf16.mxu0 0
        %402 = vmatpush1.bf16.msra.mxu0 %v360
        %403 = vmatprep.subr.bf16.mxu0 0
        %404 = vmatpush1.bf16.msra.mxu0 %v361
        %405 = vmatprep.subr.bf16.mxu0 0
        %406 = vmatpush1.bf16.msra.mxu0 %v362
        %407 = vmatprep.subr.bf16.mxu0 0
        %408 = vmatpush1.bf16.msra.mxu0 0
        %409 = vmatprep.subr.bf16.mxu0 0
        %410 = vmatpush1.bf16.msra.mxu0 0
        %411 = vmatprep.subr.bf16.mxu0 0
        %412 = vmatpush1.bf16.msra.mxu0 0
        %413 = vmatprep.subr.bf16.mxu0 0
        %414 = vmatpush1.bf16.msra.mxu0 0
        %415 = vmatprep.subr.bf16.mxu0 0
        %416 = vmatpush1.bf16.msra.mxu0 0
        %417 = vmatprep.subr.bf16.mxu0 0
        %418 = vmatpush1.bf16.msra.mxu0 0
        %419 = vmatprep.subr.bf16.mxu0 0
        %420 = vmatpush1.bf16.msra.mxu0 0
        %421 = vmatprep.subr.bf16.mxu0 0
        %422 = vmatpush1.bf16.msra.mxu0 0
        %423 = vmatprep.mubr.bf16.mxu0 0
        %424 = vmatmul.mubr.bf16.gmra.mrb[0].mxu0 %v363
        %v425 = vpop.f32.mrb[0].mxu0
        %v426 = vadd.f32 %v375, %v425
        %v427 = vpop.f32.mrb[0].mxu0
        %v428 = vpop.f32.mrb[0].mxu0
        %v429 = vadd.f32 %v376, %v428
        %v430 = vpop.f32.mrb[0].mxu0
        %431 = vmatprep.mubr.bf16.mxu0 0
        %432 = vmatmul.mubr.bf16.gmra.mrb[0].mxu0 %v364
        %v433 = vpop.f32.mrb[0].mxu0
        %v434 = vadd.f32 %v377, %v433
        %v435 = vpop.f32.mrb[0].mxu0
        %v436 = vpop.f32.mrb[0].mxu0
        %v437 = vadd.f32 %v378, %v436
        %v438 = vpop.f32.mrb[0].mxu0
        %439 = vmatprep.mubr.bf16.mxu0 0
        %440 = vmatmul.mubr.bf16.gmra.mrb[0].mxu0 %v365
        %v441 = vpop.f32.mrb[0].mxu0
        %v442 = vadd.f32 %v379, %v441
        %v443 = vpop.f32.mrb[0].mxu0
        %v444 = vpop.f32.mrb[0].mxu0
        %v445 = vadd.f32 %v380, %v444
        %v446 = vpop.f32.mrb[0].mxu0
        %447 = vmatprep.mubr.bf16.mxu0 0
        %448 = vmatmul.mubr.bf16.gmra.mrb[0].mxu0 %v366
        %v449 = vpop.f32.mrb[0].mxu0
        %v450 = vadd.f32 %v381, %v449
        %v451 = vpop.f32.mrb[0].mxu0
        %v452 = vpop.f32.mrb[0].mxu0
        %v453 = vadd.f32 %v382, %v452
        %v454 = vpop.f32.mrb[0].mxu0
        %455 = vmatprep.mubr.bf16.mxu0 0
        %456 = vmatmul.mubr.bf16.gmra.mrb[0].mxu0 %v367
        %v457 = vpop.f32.mrb[0].mxu0
        %v458 = vadd.f32 %v383, %v457
        %v459 = vpop.f32.mrb[0].mxu0
        %v460 = vpop.f32.mrb[0].mxu0
        %v461 = vadd.f32 %v384, %v460
        %v462 = vpop.f32.mrb[0].mxu0
        %463 = vmatprep.mubr.bf16.mxu0 0
        %464 = vmatmul.mubr.bf16.gmra.mrb[0].mxu0 %v368
        %v465 = vpop.f32.mrb[0].mxu0
        %v466 = vadd.f32 %v385, %v465
        %v467 = vpop.f32.mrb[0].mxu0
        %v468 = vpop.f32.mrb[0].mxu0
        %v469 = vadd.f32 %v386, %v468
        %v470 = vpop.f32.mrb[0].mxu0
        %471 = vmatprep.mubr.bf16.mxu0 0
        %472 = vmatmul.mubr.bf16.gmra.mrb[0].mxu0 %v369
        %v473 = vpop.f32.mrb[0].mxu0
        %v474 = vadd.f32 %v387, %v473
        %v475 = vpop.f32.mrb[0].mxu0
        %v476 = vpop.f32.mrb[0].mxu0
        %v477 = vadd.f32 %v388, %v476
        %v478 = vpop.f32.mrb[0].mxu0
        %479 = vmatprep.mubr.bf16.mxu0 0
        %480 = vmatmul.mubr.bf16.gmra.mrb[0].mxu0 %v370
        %v481 = vpop.f32.mrb[0].mxu0
        %v482 = vadd.f32 %v389, %v481
        %v483 = vpop.f32.mrb[0].mxu0
        %v484 = vpop.f32.mrb[0].mxu0
        %v485 = vadd.f32 %v390, %v484
        %v486 = vpop.f32.mrb[0].mxu0
        %487 = vdwg.mxu0
        %v488 = vpack.c.bf16 %v429, %v426
        %v489 = vpack.c.bf16 %v437, %v434
        %v490 = vpack.c.bf16 %v445, %v442
        %v491 = vpack.c.bf16 %v453, %v450
        %v492 = vpack.c.bf16 %v461, %v458
        %v493 = vpack.c.bf16 %v469, %v466
        %v494 = vpack.c.bf16 %v477, %v474
        %v495 = vpack.c.bf16 %v485, %v482
        %v496 = vlaneseq
        %v497 = vshrl.u32 %v496, 7
        %v498 = vsub.s32 0, %v497
        %v499 = vrot.slane %v338, %v498
        %v516 = vunpack.c.l.b16 %v302
        %v517 = vunpack.c.l.b16 %v303
        %v518 = vunpack.c.l.b16 %v304
        %v519 = vunpack.c.l.b16 %v305
        %v520 = vunpack.c.l.b16 %v306
        %v521 = vunpack.c.l.b16 %v307
        %v522 = vunpack.c.l.b16 %v308
        %v523 = vunpack.c.l.b16 %v309
        %v524 = vunpack.c.l.b16 %v310
        %v525 = vunpack.c.l.b16 %v311
        %v526 = vunpack.c.l.b16 %v312
        %v527 = vunpack.c.l.b16 %v313
        %v528 = vunpack.c.l.b16 %v314
        %v529 = vunpack.c.l.b16 %v315
        %v530 = vunpack.c.l.b16 %v316
        %v531 = vunpack.c.l.b16 %v317
        %v532 = vpack.c.b16 %v517, %v516
        %v533 = vpack.c.b16 %v519, %v518
        %v534 = vpack.c.b16 %v521, %v520
        %v535 = vpack.c.b16 %v523, %v522
        %v536 = vpack.c.b16 %v525, %v524
        %v537 = vpack.c.b16 %v527, %v526
        %v538 = vpack.c.b16 %v529, %v528
        %v539 = vpack.c.b16 %v531, %v530
        %548 = vmatprep.subr.bf16.mxu0 0
        %549 = vmatpush1.bf16.msra.mxu0 %v532
        %550 = vmatprep.subr.bf16.mxu0 0
        %551 = vmatpush1.bf16.msra.mxu0 %v533
        %552 = vmatprep.subr.bf16.mxu0 0
        %553 = vmatpush1.bf16.msra.mxu0 %v534
        %554 = vmatprep.subr.bf16.mxu0 0
        %555 = vmatpush1.bf16.msra.mxu0 %v535
        %556 = vmatprep.subr.bf16.mxu0 0
        %557 = vmatpush1.bf16.msra.mxu0 %v536
        %558 = vmatprep.subr.bf16.mxu0 0
        %559 = vmatpush1.bf16.msra.mxu0 %v537
        %560 = vmatprep.subr.bf16.mxu0 0
        %561 = vmatpush1.bf16.msra.mxu0 %v538
        %562 = vmatprep.subr.bf16.mxu0 0
        %563 = vmatpush1.bf16.msra.mxu0 %v539
        %564 = vmatprep.subr.bf16.mxu0 0
        %565 = vmatpush1.bf16.msra.mxu0 0
        %566 = vmatprep.subr.bf16.mxu0 0
        %567 = vmatpush1.bf16.msra.mxu0 0
        %568 = vmatprep.subr.bf16.mxu0 0
        %569 = vmatpush1.bf16.msra.mxu0 0
        %570 = vmatprep.subr.bf16.mxu0 0
        %571 = vmatpush1.bf16.msra.mxu0 0
        %572 = vmatprep.subr.bf16.mxu0 0
        %573 = vmatpush1.bf16.msra.mxu0 0
        %574 = vmatprep.subr.bf16.mxu0 0
        %575 = vmatpush1.bf16.msra.mxu0 0
        %576 = vmatprep.subr.bf16.mxu0 0
        %577 = vmatpush1.bf16.msra.mxu0 0
        %578 = vmatprep.subr.bf16.mxu0 0
        %579 = vmatpush1.bf16.msra.mxu0 0
        %580 = vmatprep.mubr.bf16.mxu0 0
        %581 = vmatmul.mubr.bf16.gmra.mrb[0].mxu0 %v488
        %v582 = vpop.f32.mrb[0].mxu0
        %v583 = vadd.f32 %v499, %v582
        %v584 = vpop.f32.mrb[0].mxu0
        %v585 = vpop.f32.mrb[0].mxu0
        %v586 = vadd.f32 %v499, %v585
        %v587 = vpop.f32.mrb[0].mxu0
        %588 = vmatprep.mubr.bf16.mxu0 0
        %589 = vmatmul.mubr.bf16.gmra.mrb[0].mxu0 %v489
        %v590 = vpop.f32.mrb[0].mxu0
        %v591 = vadd.f32 %v499, %v590
        %v592 = vpop.f32.mrb[0].mxu0
        %v593 = vpop.f32.mrb[0].mxu0
        %v594 = vadd.f32 %v499, %v593
        %v595 = vpop.f32.mrb[0].mxu0
        %596 = vmatprep.mubr.bf16.mxu0 0
        %597 = vmatmul.mubr.bf16.gmra.mrb[0].mxu0 %v490
        %v598 = vpop.f32.mrb[0].mxu0
        %v599 = vadd.f32 %v499, %v598
        %v600 = vpop.f32.mrb[0].mxu0
        %v601 = vpop.f32.mrb[0].mxu0
        %v602 = vadd.f32 %v499, %v601
        %v603 = vpop.f32.mrb[0].mxu0
        %604 = vmatprep.mubr.bf16.mxu0 0
        %605 = vmatmul.mubr.bf16.gmra.mrb[0].mxu0 %v491
        %v606 = vpop.f32.mrb[0].mxu0
        %v607 = vadd.f32 %v499, %v606
        %v608 = vpop.f32.mrb[0].mxu0
        %v609 = vpop.f32.mrb[0].mxu0
        %v610 = vadd.f32 %v499, %v609
        %v611 = vpop.f32.mrb[0].mxu0
        %612 = vmatprep.mubr.bf16.mxu0 0
        %613 = vmatmul.mubr.bf16.gmra.mrb[0].mxu0 %v492
        %v614 = vpop.f32.mrb[0].mxu0
        %v615 = vadd.f32 %v499, %v614
        %v616 = vpop.f32.mrb[0].mxu0
        %v617 = vpop.f32.mrb[0].mxu0
        %v618 = vadd.f32 %v499, %v617
        %v619 = vpop.f32.mrb[0].mxu0
        %620 = vmatprep.mubr.bf16.mxu0 0
        %621 = vmatmul.mubr.bf16.gmra.mrb[0].mxu0 %v493
        %v622 = vpop.f32.mrb[0].mxu0
        %v623 = vadd.f32 %v499, %v622
        %v624 = vpop.f32.mrb[0].mxu0
        %v625 = vpop.f32.mrb[0].mxu0
        %v626 = vadd.f32 %v499, %v625
        %v627 = vpop.f32.mrb[0].mxu0
        %628 = vmatprep.mubr.bf16.mxu0 0
        %629 = vmatmul.mubr.bf16.gmra.mrb[0].mxu0 %v494
        %v630 = vpop.f32.mrb[0].mxu0
        %v631 = vadd.f32 %v499, %v630
        %v632 = vpop.f32.mrb[0].mxu0
        %v633 = vpop.f32.mrb[0].mxu0
        %v634 = vadd.f32 %v499, %v633
        %v635 = vpop.f32.mrb[0].mxu0
        %636 = vmatprep.mubr.bf16.mxu0 0
        %637 = vmatmul.mubr.bf16.gmra.mrb[0].mxu0 %v495
        %v638 = vpop.f32.mrb[0].mxu0
        %v639 = vadd.f32 %v499, %v638
        %v640 = vpop.f32.mrb[0].mxu0
        %v641 = vpop.f32.mrb[0].mxu0
        %v642 = vadd.f32 %v499, %v641
        %v643 = vpop.f32.mrb[0].mxu0
        %644 = vdwg.mxu0
        %v645 = vmax.f32 %v583, 0.0
        %v646 = vmax.f32 %v586, 0.0
        %v647 = vmax.f32 %v591, 0.0
        %v648 = vmax.f32 %v594, 0.0
        %v649 = vmax.f32 %v599, 0.0
        %v650 = vmax.f32 %v602, 0.0
        %v651 = vmax.f32 %v607, 0.0
        %v652 = vmax.f32 %v610, 0.0
        %v653 = vmax.f32 %v615, 0.0
        %v654 = vmax.f32 %v618, 0.0
        %v655 = vmax.f32 %v623, 0.0
        %v656 = vmax.f32 %v626, 0.0
        %v657 = vmax.f32 %v631, 0.0
        %v658 = vmax.f32 %v634, 0.0
        %v659 = vmax.f32 %v639, 0.0
        %v660 = vmax.f32 %v642, 0.0
        %v661 = vpack.c.bf16 %v646, %v645
        %v662 = vpack.c.bf16 %v648, %v647
        %v663 = vpack.c.bf16 %v650, %v649
        %v664 = vpack.c.bf16 %v652, %v651
        %v665 = vpack.c.bf16 %v654, %v653
        %v666 = vpack.c.bf16 %v656, %v655
        %v667 = vpack.c.bf16 %v658, %v657
        %v668 = vpack.c.bf16 %v660, %v659
        %v669 = vlaneseq
        %v670 = vshrl.u32 %v669, 7
        %v671 = vsub.s32 1, %v670
        %v672 = vrot.slane %v338, %v671
        %v689 = vunpack.c.l.b16 %v320
        %v690 = vunpack.c.l.b16 %v321
        %v691 = vunpack.c.l.b16 %v322
        %v692 = vunpack.c.l.b16 %v323
        %v693 = vunpack.c.l.b16 %v324
        %v694 = vunpack.c.l.b16 %v325
        %v695 = vunpack.c.l.b16 %v326
        %v696 = vunpack.c.l.b16 %v327
        %v697 = vunpack.c.l.b16 %v328
        %v698 = vunpack.c.l.b16 %v329
        %v699 = vunpack.c.l.b16 %v330
        %v700 = vunpack.c.l.b16 %v331
        %v701 = vunpack.c.l.b16 %v332
        %v702 = vunpack.c.l.b16 %v333
        %v703 = vunpack.c.l.b16 %v334
        %v704 = vunpack.c.l.b16 %v335
        %v705 = vpack.c.b16 %v690, %v689
        %v706 = vpack.c.b16 %v692, %v691
        %v707 = vpack.c.b16 %v694, %v693
        %v708 = vpack.c.b16 %v696, %v695
        %v709 = vpack.c.b16 %v698, %v697
        %v710 = vpack.c.b16 %v700, %v699
        %v711 = vpack.c.b16 %v702, %v701
        %v712 = vpack.c.b16 %v704, %v703
        %721 = vmatprep.subr.bf16.mxu0 0
        %722 = vmatpush1.bf16.msra.mxu0 %v705
        %723 = vmatprep.subr.bf16.mxu0 0
        %724 = vmatpush1.bf16.msra.mxu0 %v706
        %725 = vmatprep.subr.bf16.mxu0 0
        %726 = vmatpush1.bf16.msra.mxu0 %v707
        %727 = vmatprep.subr.bf16.mxu0 0
        %728 = vmatpush1.bf16.msra.mxu0 %v708
        %729 = vmatprep.subr.bf16.mxu0 0
        %730 = vmatpush1.bf16.msra.mxu0 %v709
        %731 = vmatprep.subr.bf16.mxu0 0
        %732 = vmatpush1.bf16.msra.mxu0 %v710
        %733 = vmatprep.subr.bf16.mxu0 0
        %734 = vmatpush1.bf16.msra.mxu0 %v711
        %735 = vmatprep.subr.bf16.mxu0 0
        %736 = vmatpush1.bf16.msra.mxu0 %v712
        %737 = vmatprep.subr.bf16.mxu0 0
        %738 = vmatpush1.bf16.msra.mxu0 0
        %739 = vmatprep.subr.bf16.mxu0 0
        %740 = vmatpush1.bf16.msra.mxu0 0
        %741 = vmatprep.subr.bf16.mxu0 0
        %742 = vmatpush1.bf16.msra.mxu0 0
        %743 = vmatprep.subr.bf16.mxu0 0
        %744 = vmatpush1.bf16.msra.mxu0 0
        %745 = vmatprep.subr.bf16.mxu0 0
        %746 = vmatpush1.bf16.msra.mxu0 0
        %747 = vmatprep.subr.bf16.mxu0 0
        %748 = vmatpush1.bf16.msra.mxu0 0
        %749 = vmatprep.subr.bf16.mxu0 0
        %750 = vmatpush1.bf16.msra.mxu0 0
        %751 = vmatprep.subr.bf16.mxu0 0
        %752 = vmatpush1.bf16.msra.mxu0 0
        %753 = vmatprep.mubr.bf16.mxu0 0
        %754 = vmatmul.mubr.bf16.gmra.mrb[0].mxu0 %v661
        %v755 = vpop.f32.mrb[0].mxu0
        %v756 = vadd.f32 %v672, %v755
        %v757 = vpop.f32.mrb[0].mxu0
        %v758 = vpop.f32.mrb[0].mxu0
        %v759 = vadd.f32 %v672, %v758
        %v760 = vpop.f32.mrb[0].mxu0
        %761 = vmatprep.mubr.bf16.mxu0 0
        %762 = vmatmul.mubr.bf16.gmra.mrb[0].mxu0 %v662
        %v763 = vpop.f32.mrb[0].mxu0
        %v764 = vadd.f32 %v672, %v763
        %v765 = vpop.f32.mrb[0].mxu0
        %v766 = vpop.f32.mrb[0].mxu0
        %v767 = vadd.f32 %v672, %v766
        %v768 = vpop.f32.mrb[0].mxu0
        %769 = vmatprep.mubr.bf16.mxu0 0
        %770 = vmatmul.mubr.bf16.gmra.mrb[0].mxu0 %v663
        %v771 = vpop.f32.mrb[0].mxu0
        %v772 = vadd.f32 %v672, %v771
        %v773 = vpop.f32.mrb[0].mxu0
        %v774 = vpop.f32.mrb[0].mxu0
        %v775 = vadd.f32 %v672, %v774
        %v776 = vpop.f32.mrb[0].mxu0
        %777 = vmatprep.mubr.bf16.mxu0 0
        %778 = vmatmul.mubr.bf16.gmra.mrb[0].mxu0 %v664
        %v779 = vpop.f32.mrb[0].mxu0
        %v780 = vadd.f32 %v672, %v779
        %v781 = vpop.f32.mrb[0].mxu0
        %v782 = vpop.f32.mrb[0].mxu0
        %v783 = vadd.f32 %v672, %v782
        %v784 = vpop.f32.mrb[0].mxu0
        %785 = vmatprep.mubr.bf16.mxu0 0
        %786 = vmatmul.mubr.bf16.gmra.mrb[0].mxu0 %v665
        %v787 = vpop.f32.mrb[0].mxu0
        %v788 = vadd.f32 %v672, %v787
        %v789 = vpop.f32.mrb[0].mxu0
        %v790 = vpop.f32.mrb[0].mxu0
        %v791 = vadd.f32 %v672, %v790
        %v792 = vpop.f32.mrb[0].mxu0
        %793 = vmatprep.mubr.bf16.mxu0 0
        %794 = vmatmul.mubr.bf16.gmra.mrb[0].mxu0 %v666
        %v795 = vpop.f32.mrb[0].mxu0
        %v796 = vadd.f32 %v672, %v795
        %v797 = vpop.f32.mrb[0].mxu0
        %v798 = vpop.f32.mrb[0].mxu0
        %v799 = vadd.f32 %v672, %v798
        %v800 = vpop.f32.mrb[0].mxu0
        %801 = vmatprep.mubr.bf16.mxu0 0
        %802 = vmatmul.mubr.bf16.gmra.mrb[0].mxu0 %v667
        %v803 = vpop.f32.mrb[0].mxu0
        %v804 = vadd.f32 %v672, %v803
        %v805 = vpop.f32.mrb[0].mxu0
        %v806 = vpop.f32.mrb[0].mxu0
        %v807 = vadd.f32 %v672, %v806
        %v808 = vpop.f32.mrb[0].mxu0
        %809 = vmatprep.mubr.bf16.mxu0 0
        %810 = vmatmul.mubr.bf16.gmra.mrb[0].mxu0 %v668
        %v811 = vpop.f32.mrb[0].mxu0
        %v812 = vadd.f32 %v672, %v811
        %v813 = vpop.f32.mrb[0].mxu0
        %v814 = vpop.f32.mrb[0].mxu0
        %v815 = vadd.f32 %v672, %v814
        %v816 = vpop.f32.mrb[0].mxu0
        %817 = vdwg.mxu0
        %v818 = vadd.f32 %v339, %v756
        %v819 = vadd.f32 %v340, %v759
        %v820 = vadd.f32 %v341, %v764
        %v821 = vadd.f32 %v342, %v767
        %v822 = vadd.f32 %v343, %v772
        %v823 = vadd.f32 %v344, %v775
        %v824 = vadd.f32 %v345, %v780
        %v825 = vadd.f32 %v346, %v783
        %v826 = vadd.f32 %v347, %v788
        %v827 = vadd.f32 %v348, %v791
        %v828 = vadd.f32 %v349, %v796
        %v829 = vadd.f32 %v350, %v799
        %v830 = vadd.f32 %v351, %v804
        %v831 = vadd.f32 %v352, %v807
        %v832 = vadd.f32 %v353, %v812
        %v833 = vadd.f32 %v354, %v815
        %v834 = vmax.f32 %v818, 0.0
        %v835 = vmax.f32 %v819, 0.0
        %v836 = vmax.f32 %v820, 0.0
        %v837 = vmax.f32 %v821, 0.0
        %v838 = vmax.f32 %v822, 0.0
        %v839 = vmax.f32 %v823, 0.0
        %v840 = vmax.f32 %v824, 0.0
        %v841 = vmax.f32 %v825, 0.0
        %v842 = vmax.f32 %v826, 0.0
        %v843 = vmax.f32 %v827, 0.0
        %v844 = vmax.f32 %v828, 0.0
        %v845 = vmax.f32 %v829, 0.0
        %v846 = vmax.f32 %v830, 0.0
        %v847 = vmax.f32 %v831, 0.0
        %v848 = vmax.f32 %v832, 0.0
        %v849 = vmax.f32 %v833, 0.0
        %850 = vst [vmem:[#allocation2] sm:$0xff] %v834
        %851 = vst [vmem:[#allocation2 + $0x8] sm:$0xff] %v835
        %852 = vst [vmem:[#allocation2 + $0x10] sm:$0xff] %v836
        %853 = vst [vmem:[#allocation2 + $0x18] sm:$0xff] %v837
        %854 = vst [vmem:[#allocation2 + $0x20] sm:$0xff] %v838
        %855 = vst [vmem:[#allocation2 + $0x28] sm:$0xff] %v839
        %856 = vst [vmem:[#allocation2 + $0x30] sm:$0xff] %v840
        %857 = vst [vmem:[#allocation2 + $0x38] sm:$0xff] %v841
        %858 = vst [vmem:[#allocation2 + $0x40] sm:$0xff] %v842
        %859 = vst [vmem:[#allocation2 + $0x48] sm:$0xff] %v843
        %860 = vst [vmem:[#allocation2 + $0x50] sm:$0xff] %v844
        %861 = vst [vmem:[#allocation2 + $0x58] sm:$0xff] %v845
        %862 = vst [vmem:[#allocation2 + $0x60] sm:$0xff] %v846
        %863 = vst [vmem:[#allocation2 + $0x68] sm:$0xff] %v847
        %864 = vst [vmem:[#allocation2 + $0x70] sm:$0xff] %v848
        %865 = vst [vmem:[#allocation2 + $0x78] sm:$0xff] %v849
        %p866 = scmp.eq.s32.totalorder %s22, 1
        // Predicated region
        $region69: #{tpu_custom_call.1} parent=43 // pred_check
          %p867 = pneg %p866
        $region70: #{tpu_custom_call.1} parent=43 // pred_check_branch
          %869 = sbr.rel (%p867) target = $region72
        $region71: #{tpu_custom_call.1} parent=43 // pred_region
          %v870 = vld [vmem:[#allocation2] sm:$0xff]
          %v871 = vld [vmem:[#allocation2 + $0x8] sm:$0xff]
          %v872 = vld [vmem:[#allocation2 + $0x10] sm:$0xff]
          %v873 = vld [vmem:[#allocation2 + $0x18] sm:$0xff]
          %v874 = vld [vmem:[#allocation2 + $0x20] sm:$0xff]
          %v875 = vld [vmem:[#allocation2 + $0x28] sm:$0xff]
          %v876 = vld [vmem:[#allocation2 + $0x30] sm:$0xff]
          %v877 = vld [vmem:[#allocation2 + $0x38] sm:$0xff]
          %v878 = vld [vmem:[#allocation2 + $0x40] sm:$0xff]
          %v879 = vld [vmem:[#allocation2 + $0x48] sm:$0xff]
          %v880 = vld [vmem:[#allocation2 + $0x50] sm:$0xff]
          %v881 = vld [vmem:[#allocation2 + $0x58] sm:$0xff]
          %v882 = vld [vmem:[#allocation2 + $0x60] sm:$0xff]
          %v883 = vld [vmem:[#allocation2 + $0x68] sm:$0xff]
          %v884 = vld [vmem:[#allocation2 + $0x70] sm:$0xff]
          %v885 = vld [vmem:[#allocation2 + $0x78] sm:$0xff]
          %v886 = vpack.c.bf16 %v871, %v870
          %v887 = vpack.c.bf16 %v873, %v872
          %v888 = vpack.c.bf16 %v875, %v874
          %v889 = vpack.c.bf16 %v877, %v876
          %v890 = vpack.c.bf16 %v879, %v878
          %v891 = vpack.c.bf16 %v881, %v880
          %v892 = vpack.c.bf16 %v883, %v882
          %v893 = vpack.c.bf16 %v885, %v884
          %v894 = vld [vmem:[%s5] sm:$0xf]
          %895 = vmatprep.subr.bf16.mxu0 0
          %896 = vmatpush1.bf16.msra.mxu0 %v886
          %897 = vmatprep.subr.bf16.mxu0 0
          %898 = vmatpush1.bf16.msra.mxu0 %v887
          %899 = vmatprep.subr.bf16.mxu0 0
          %900 = vmatpush1.bf16.msra.mxu0 %v888
          %901 = vmatprep.subr.bf16.mxu0 0
          %902 = vmatpush1.bf16.msra.mxu0 %v889
          %903 = vmatprep.subr.bf16.mxu0 0
          %904 = vmatpush1.bf16.msra.mxu0 %v890
          %905 = vmatprep.subr.bf16.mxu0 0
          %906 = vmatpush1.bf16.msra.mxu0 %v891
          %907 = vmatprep.subr.bf16.mxu0 0
          %908 = vmatpush1.bf16.msra.mxu0 %v892
          %909 = vmatprep.subr.bf16.mxu0 0
          %910 = vmatpush1.bf16.msra.mxu0 %v893
          %911 = vmatprep.subr.bf16.mxu0 0
          %912 = vmatpush1.bf16.msra.mxu0 0
          %913 = vmatprep.subr.bf16.mxu0 0
          %914 = vmatpush1.bf16.msra.mxu0 0
          %915 = vmatprep.subr.bf16.mxu0 0
          %916 = vmatpush1.bf16.msra.mxu0 0
          %917 = vmatprep.subr.bf16.mxu0 0
          %918 = vmatpush1.bf16.msra.mxu0 0
          %919 = vmatprep.subr.bf16.mxu0 0
          %920 = vmatpush1.bf16.msra.mxu0 0
          %921 = vmatprep.subr.bf16.mxu0 0
          %922 = vmatpush1.bf16.msra.mxu0 0
          %923 = vmatprep.subr.bf16.mxu0 0
          %924 = vmatpush1.bf16.msra.mxu0 0
          %925 = vmatprep.subr.bf16.mxu0 0
          %926 = vmatpush1.bf16.msra.mxu0 0
          %927 = vmatprep.mubr.bf16.mxu0 0
          %928 = vmatmul.mubr.bf16.gmra.mrb[0].mxu0 %v894
          %v929 = vpop.f32.mrb[0].mxu0
          %v930 = vadd.f32 0.0, %v929
          %v931 = vpop.f32.mrb[0].mxu0
          %v932 = vpop.f32.mrb[0].mxu0
          %v933 = vpop.f32.mrb[0].mxu0
          %934 = vdwg.mxu0
          %v935 = vpack.c.bf16 %v930, %v930
          %v936 = vld [vmem:[#allocation10] sm:$0xf]
          %v937 = vld [vmem:[#allocation10 + $0x4] sm:$0xf]
          %v938 = vld [vmem:[#allocation10 + $0x8] sm:$0xf]
          %v939 = vld [vmem:[#allocation10 + $0xc] sm:$0xf]
          %v940 = vld [vmem:[#allocation10 + $0x10] sm:$0xf]
          %v941 = vld [vmem:[#allocation10 + $0x14] sm:$0xf]
          %v942 = vld [vmem:[#allocation10 + $0x18] sm:$0xf]
          %v943 = vld [vmem:[#allocation10 + $0x1c] sm:$0xf]
          %v944 = vld [vmem:[#allocation10 + $0x20] sm:$0xf]
          %v945 = vld [vmem:[#allocation10 + $0x24] sm:$0xf]
          %v946 = vld [vmem:[#allocation10 + $0x28] sm:$0xf]
          %v947 = vld [vmem:[#allocation10 + $0x2c] sm:$0xf]
          %v948 = vld [vmem:[#allocation10 + $0x30] sm:$0xf]
          %v949 = vld [vmem:[#allocation10 + $0x34] sm:$0xf]
          %v950 = vld [vmem:[#allocation10 + $0x38] sm:$0xf]
          %v951 = vld [vmem:[#allocation10 + $0x3c] sm:$0xf]
          %v952 = vld [vmem:[%s7] sm:$0x1]
          %v954 = vlaneseq
          %v955 = vshrl.u32 %v954, 7
          %v956 = vsub.s32 0, %v955
          %v957 = vrot.slane %v952, %v956
          %v975 = vunpack.c.l.b16 %v936
          %v976 = vunpack.c.l.b16 %v937
          %v977 = vunpack.c.l.b16 %v938
          %v978 = vunpack.c.l.b16 %v939
          %v979 = vunpack.c.l.b16 %v940
          %v980 = vunpack.c.l.b16 %v941
          %v981 = vunpack.c.l.b16 %v942
          %v982 = vunpack.c.l.b16 %v943
          %v983 = vunpack.c.l.b16 %v944
          %v984 = vunpack.c.l.b16 %v945
          %v985 = vunpack.c.l.b16 %v946
          %v986 = vunpack.c.l.b16 %v947
          %v987 = vunpack.c.l.b16 %v948
          %v988 = vunpack.c.l.b16 %v949
          %v989 = vunpack.c.l.b16 %v950
          %v990 = vunpack.c.l.b16 %v951
          %v991 = vpack.c.b16 %v976, %v975
          %v992 = vpack.c.b16 %v978, %v977
          %v993 = vpack.c.b16 %v980, %v979
          %v994 = vpack.c.b16 %v982, %v981
          %v995 = vpack.c.b16 %v984, %v983
          %v996 = vpack.c.b16 %v986, %v985
          %v997 = vpack.c.b16 %v988, %v987
          %v998 = vpack.c.b16 %v990, %v989
          %1007 = vmatprep.subr.bf16.mxu0 0
          %1008 = vmatpush1.bf16.msra.mxu0 %v991
          %1009 = vmatprep.subr.bf16.mxu0 0
          %1010 = vmatpush1.bf16.msra.mxu0 %v992
          %1011 = vmatprep.subr.bf16.mxu0 0
          %1012 = vmatpush1.bf16.msra.mxu0 %v993
          %1013 = vmatprep.subr.bf16.mxu0 0
          %1014 = vmatpush1.bf16.msra.mxu0 %v994
          %1015 = vmatprep.subr.bf16.mxu0 0
          %1016 = vmatpush1.bf16.msra.mxu0 %v995
          %1017 = vmatprep.subr.bf16.mxu0 0
          %1018 = vmatpush1.bf16.msra.mxu0 %v996
          %1019 = vmatprep.subr.bf16.mxu0 0
          %1020 = vmatpush1.bf16.msra.mxu0 %v997
          %1021 = vmatprep.subr.bf16.mxu0 0
          %1022 = vmatpush1.bf16.msra.mxu0 %v998
          %1023 = vmatprep.subr.bf16.mxu0 0
          %1024 = vmatpush1.bf16.msra.mxu0 0
          %1025 = vmatprep.subr.bf16.mxu0 0
          %1026 = vmatpush1.bf16.msra.mxu0 0
          %1027 = vmatprep.subr.bf16.mxu0 0
          %1028 = vmatpush1.bf16.msra.mxu0 0
          %1029 = vmatprep.subr.bf16.mxu0 0
          %1030 = vmatpush1.bf16.msra.mxu0 0
          %1031 = vmatprep.subr.bf16.mxu0 0
          %1032 = vmatpush1.bf16.msra.mxu0 0
          %1033 = vmatprep.subr.bf16.mxu0 0
          %1034 = vmatpush1.bf16.msra.mxu0 0
          %1035 = vmatprep.subr.bf16.mxu0 0
          %1036 = vmatpush1.bf16.msra.mxu0 0
          %1037 = vmatprep.subr.bf16.mxu0 0
          %1038 = vmatpush1.bf16.msra.mxu0 0
          %1039 = vmatprep.mubr.bf16.mxu0 0
          %1040 = vmatmul.mubr.bf16.gmra.mrb[0].mxu0 %v935
          %v1041 = vpop.f32.mrb[0].mxu0
          %v1042 = vadd.f32 %v957, %v1041
          %v1043 = vpop.f32.mrb[0].mxu0
          %v1044 = vpop.f32.mrb[0].mxu0
          %v1045 = vpop.f32.mrb[0].mxu0
          %1046 = vdwg.mxu0
          %1047 = vst [vmem:[#allocation11] sm:$0xff] %v1042
        $region72: #{tpu_custom_call.1} parent=43 // pred_fallthru
          _
        // Predicated region
        $region73: #{tpu_custom_call.1} parent=43 // pred_check
          %p1048 = pneg %p161
        $region74: #{tpu_custom_call.1} parent=43 // pred_check_branch
          %1050 = sbr.rel (%p1048) target = $region76
        $region75: #{tpu_custom_call.1} parent=43 // pred_region
          %s1052 = ssub.s32 128, 128
          %1053 = vsyncadd [#allocation7], %s1052
          %s1055 = sshll.u32 [#allocation11], 4
          %s1056 = int_to_ptr.vmem [resolvable:$true] %s1055
          %1058 = dma.vmem_to_hbm [thread:$0]  %s1056, 128, %s8, [#allocation7]
        $region76: #{tpu_custom_call.1} parent=43 // pred_fallthru
          _
        // Predicated region
        $region77: #{tpu_custom_call.1} parent=43 // pred_check
          %p1059 = pneg %p161
        $region78: #{tpu_custom_call.1} parent=43 // pred_check_branch
          %1061 = sbr.rel (%p1059) target = $region80
        $region79: #{tpu_custom_call.1} parent=43 // pred_region
          %1062 = dma.done [#allocation7], 128
        $region80: #{tpu_custom_call.1} parent=43 // pred_fallthru
          _
      $region44: #{tpu_custom_call.1} parent=5 // pred_fallthru
        _
      %p1063 = scmp.le.s32.totalorder 2, %s17
      // Predicated region
      $region81: #{tpu_custom_call.1} parent=5 // pred_check
        %p1064 = pneg %p1063
      $region82: #{tpu_custom_call.1} parent=5 // pred_check_branch
        %1066 = sbr.rel (%p1064) target = $region84
      $region83: #{tpu_custom_call.1} parent=5 // pred_region
        %s1067 = ssub.s32 %s17, 2
      $region84: #{tpu_custom_call.1} parent=5 // pred_fallthru
        _
    $region6: #{tpu_custom_call.1} parent=1 // loop_footer
      %s21 = sadd.s32 1, %s17
    $region7: #{tpu_custom_call.1} parent=1 // loop_footer_branch
      %16 = sbr.rel target = $region3
    $region8: #{tpu_custom_call.1} parent=1 // loop_exit
      _
    %1068 = vsyncpa [#allocation6], 1
    %s1069 = scalar_lea.sflag [#allocation6], 1
    %1070 = vsyncpa %s1069, 1
    %1071 = vsyncpa [#allocation9], 1
    %1072 = vsyncpa [#allocation7], 1
    %s1073 = scalar_lea.sflag [#allocation7], 1
    %1074 = vsyncpa %s1073, 1
  %1075 = vsyncmov [#allocation4]
  %s1076 = vpop.sfrf %1075
  %p1077 = scmp.eq.s32.totalorder %s1076, 0
  %p1078 = pneg %p1077
  %1080 = shalt.err (%p1078)
  %s1081 = scalar_lea.sflag [#allocation4], 1
  %1082 = vsyncmov %s1081
  %s1083 = vpop.sfrf %1082
  %p1084 = scmp.eq.s32.totalorder %s1083, 0
  %p1085 = pneg %p1084
  %1087 = shalt.err (%p1085)

</llo_original>
